<compile_context>
chip_gen: v7x
topology: tpu7x:2x2x1
jax: 0.10.0
libtpu: 0.0.40
codegen_flags: <defaults>
</compile_context>

<pallas_src>
import functools

import jax
import jax.numpy as jnp
from jax.experimental import pallas as pl
from jax.experimental.pallas import tpu as pltpu

LANE = 128          # TPU vreg lane width
NEG_INF = -1e30     # padded-logit bias: exp(NEG_INF - m) underflows to exactly 0


def _round_up(n, m):
    return ((n + m - 1) // m) * m


def actor_net_kernel(x_ref, w1_ref, b1_ref, w2_ref, b2_ref, o_ref, *, action_dim):
    # fc1 + ReLU (MXU matmul, f32 accumulate); hidden is lane-dense (padded to 128)
    x = x_ref[...]
    h = jnp.dot(x, w1_ref[...], preferred_element_type=jnp.float32) + b1_ref[...]
    h = jnp.maximum(h, 0.0)
    # fc2 into a lane-dense (TB, 128) logit tile held in registers; padded lanes carry NEG_INF
    logits = jnp.dot(h, w2_ref[...], preferred_element_type=jnp.float32) + b2_ref[...]
    # numerically-stable softmax over dim=1; padded lanes contribute exp(...) == 0
    m = jnp.max(logits, axis=1, keepdims=True)
    e = jnp.exp(logits - m)
    denom = jnp.sum(e, axis=1, keepdims=True)
    probs = e / denom                                   # exact divide: rows sum to 1
    # store only the real action columns (narrow masked vst; output array is not padded)
    o_ref[...] = probs[:, :action_dim].astype(o_ref.dtype)


@functools.partial(jax.jit, static_argnames=("action_dim", "block_batch"))
def actor_net_forward(x, w1p, b1p, w2p, b2p, *, action_dim, block_batch=1024):
    batch, state_dim = x.shape
    hidden_p = w1p.shape[1]
    padded_actions = w2p.shape[1]   # lane-dense (multiple of 128), in-register only

    # Batch tile: multiple of 8 sublanes, aim for >= 4 grid steps (v7x megacore + pipelining),
    # capped by block_batch (v6e/v5e like bigger tiles for HBM-roofline amortization).
    tb = min(block_batch, max(8, _round_up(pl.cdiv(batch, 4), 8)))
    grid = (pl.cdiv(batch, tb),)   # ragged final block OK: row-wise op, OOB writes are masked

    kernel = functools.partial(actor_net_kernel, action_dim=action_dim)
    return pl.pallas_call(
        kernel,
        out_shape=jax.ShapeDtypeStruct((batch, action_dim), jnp.float32),
        grid=grid,
        in_specs=[
            pl.BlockSpec((tb, state_dim), lambda i: (i, 0)),               # x: tiled over batch
            pl.BlockSpec((state_dim, hidden_p), lambda i: (0, 0)),         # w1 (padded): resident
            pl.BlockSpec((1, hidden_p), lambda i: (0, 0)),                 # b1 (padded): resident
            pl.BlockSpec((hidden_p, padded_actions), lambda i: (0, 0)),    # w2 (padded): resident
            pl.BlockSpec((1, padded_actions), lambda i: (0, 0)),           # b2 (padded): resident
        ],
        out_specs=pl.BlockSpec((tb, action_dim), lambda i: (i, 0)),        # narrow, unpadded out
        compiler_params=pltpu.CompilerParams(
            dimension_semantics=("parallel",),   # shard batch tiles across TCs on v7x
        ),
    )(x, w1p, b1p, w2p, b2p)


def init_linear_params(key, in_features, out_features):
    """Deterministic init mimicking PyTorch nn.Linear default (uniform +-1/sqrt(fan_in))."""
    k_w, k_b = jax.random.split(key)
    bound = 1.0 / jnp.sqrt(jnp.float32(in_features))
    # stored as (in_features, out_features) so kernel does x @ W
    w = jax.random.uniform(k_w, (in_features, out_features), jnp.float32, -bound, bound)
    b = jax.random.uniform(k_b, (1, out_features), jnp.float32, -bound, bound)
    return w, b


def prepare_params(w1, b1, w2, b2, lane=LANE):
    """One-time (outside the per-call hot path) lane-dense padding of both layers.

    * hidden padded to a multiple of 128 with zeros: ReLU(0 + 0) = 0 and the corresponding
      zero rows of w2 contribute nothing -> numerics are exact.
    * fc2 output padded to a multiple of 128: padded weight columns are zero, padded bias
      lanes are NEG_INF so the padded logits vanish (exp -> 0) inside the in-kernel softmax.
    """
    state_dim, hidden = w1.shape
    _, action_dim = w2.shape
    hidden_p = _round_up(hidden, lane)
    actions_p = _round_up(action_dim, lane)

    w1p = jnp.zeros((state_dim, hidden_p), jnp.float32).at[:, :hidden].set(w1)
    b1p = jnp.zeros((1, hidden_p), jnp.float32).at[:, :hidden].set(b1)
    w2p = jnp.zeros((hidden_p, actions_p), jnp.float32).at[:hidden, :action_dim].set(w2)
    b2p = jnp.full((1, actions_p), NEG_INF, jnp.float32).at[:, :action_dim].set(b2)
    return w1p, b1p, w2p, b2p


def reference_forward(x, w1, b1, w2, b2):
    h = jnp.maximum(x @ w1 + b1, 0.0)
    return jax.nn.softmax(h @ w2 + b2, axis=1)


if __name__ == "__main__":
    state_dim = 16
    hidden_dim = 32
    action_dim = 4
    batch = 8

    key = jax.random.PRNGKey(0)
    k_x, k_l1, k_l2 = jax.random.split(key, 3)

    x = jax.random.normal(k_x, (batch, state_dim), jnp.float32)
    w1, b1 = init_linear_params(k_l1, state_dim, hidden_dim)
    w2, b2 = init_linear_params(k_l2, hidden_dim, action_dim)

    # one-time parameter prep (lane-dense hidden + output layer), kept out of the per-call path
    w1p, b1p, w2p, b2p = prepare_params(w1, b1, w2, b2)

    out = actor_net_forward(x, w1p, b1p, w2p, b2p, action_dim=action_dim)
    out = jax.block_until_ready(out)

    ref = reference_forward(x, w1, b1, w2, b2)
    assert out.shape == (batch, action_dim)
    assert jnp.allclose(out, ref, atol=1e-5, rtol=1e-5)
    assert jnp.allclose(jnp.sum(out, axis=1), 1.0, atol=1e-5)

    print("KERNEL_OK")
</pallas_src>

<mosaic_0001>
module attributes {stable_mosaic.version = 11 : i64} {
  func.func @actor_net_kernel(%arg0: i32, %arg1: memref<8x16xf32, #tpu.memory_space<vmem>>, %arg2: memref<16x128xf32, #tpu.memory_space<vmem>>, %arg3: memref<1x128xf32, #tpu.memory_space<vmem>>, %arg4: memref<128x128xf32, #tpu.memory_space<vmem>>, %arg5: memref<1x128xf32, #tpu.memory_space<vmem>>, %arg6: memref<8x4xf32, #tpu.memory_space<vmem>>) attributes {dimension_semantics = [#tpu.dimension_semantics<parallel>], iteration_bounds = array<i64: 1>, scalar_prefetch = 0 : i64, scratch_operands = 0 : i64, tpu.core_type = #tpu.core_type<tc>, window_params = [{transform_indices = @transform_0, window_bounds = array<i64: 8, 16>}, {pipeline_mode = #tpu.pipeline_mode<synchronous>, transform_indices = @transform_1, window_bounds = array<i64: 16, 128>}, {pipeline_mode = #tpu.pipeline_mode<synchronous>, transform_indices = @transform_2, window_bounds = array<i64: 1, 128>}, {pipeline_mode = #tpu.pipeline_mode<synchronous>, transform_indices = @transform_3, window_bounds = array<i64: 128, 128>}, {pipeline_mode = #tpu.pipeline_mode<synchronous>, transform_indices = @transform_4, window_bounds = array<i64: 1, 128>}, {transform_indices = @transform_5, window_bounds = array<i64: 8, 4>}]} {
    %c0 = arith.constant 0 : index
    %c0_0 = arith.constant 0 : index
    %0 = vector.load %arg1[%c0, %c0_0] : memref<8x16xf32, #tpu.memory_space<vmem>>, vector<8x16xf32>
    %c0_1 = arith.constant 0 : index
    %c0_2 = arith.constant 0 : index
    %1 = vector.load %arg2[%c0_1, %c0_2] : memref<16x128xf32, #tpu.memory_space<vmem>>, vector<16x128xf32>
    %cst = arith.constant dense<0.000000e+00> : vector<8x128xf32>
    %2 = tpu.matmul %0, %1, %cst {dimension_numbers = #tpu.dot_dimension_numbers<[1], [0], [0], [1], [0, 0, 1, 1], [], []>} : vector<8x16xf32>, vector<16x128xf32>, vector<8x128xf32> -> vector<8x128xf32>
    %c0_3 = arith.constant 0 : index
    %c0_4 = arith.constant 0 : index
    %3 = vector.load %arg3[%c0_3, %c0_4] : memref<1x128xf32, #tpu.memory_space<vmem>>, vector<1x128xf32>
    %4 = vector.broadcast %3 : vector<1x128xf32> to vector<8x128xf32>
    %5 = arith.addf %2, %4 : vector<8x128xf32>
    %cst_5 = arith.constant 0.000000e+00 : f32
    %6 = vector.broadcast %cst_5 : f32 to vector<8x128xf32>
    %7 = arith.maximumf %5, %6 : vector<8x128xf32>
    %c0_6 = arith.constant 0 : index
    %c0_7 = arith.constant 0 : index
    %8 = vector.load %arg4[%c0_6, %c0_7] : memref<128x128xf32, #tpu.memory_space<vmem>>, vector<128x128xf32>
    %cst_8 = arith.constant dense<0.000000e+00> : vector<8x128xf32>
    %9 = tpu.matmul %7, %8, %cst_8 {dimension_numbers = #tpu.dot_dimension_numbers<[1], [0], [0], [1], [0, 0, 1, 1], [], []>} : vector<8x128xf32>, vector<128x128xf32>, vector<8x128xf32> -> vector<8x128xf32>
    %c0_9 = arith.constant 0 : index
    %c0_10 = arith.constant 0 : index
    %10 = vector.load %arg5[%c0_9, %c0_10] : memref<1x128xf32, #tpu.memory_space<vmem>>, vector<1x128xf32>
    %11 = vector.broadcast %10 : vector<1x128xf32> to vector<8x128xf32>
    %12 = arith.addf %9, %11 : vector<8x128xf32>
    %cst_11 = arith.constant dense<0xFF800000> : vector<8xf32>
    %13 = vector.multi_reduction <maximumf>, %12, %cst_11 [1] : vector<8x128xf32> to vector<8xf32>
    %14 = vector.shape_cast %13 : vector<8xf32> to vector<8x1xf32>
    %15 = vector.broadcast %14 : vector<8x1xf32> to vector<8x128xf32>
    %16 = arith.subf %12, %15 : vector<8x128xf32>
    %17 = math.exp %16 : vector<8x128xf32>
    %cst_12 = arith.constant dense<0.000000e+00> : vector<8xf32>
    %18 = vector.multi_reduction <add>, %17, %cst_12 [1] : vector<8x128xf32> to vector<8xf32>
    %19 = vector.shape_cast %18 : vector<8xf32> to vector<8x1xf32>
    %20 = vector.broadcast %19 : vector<8x1xf32> to vector<8x128xf32>
    %21 = arith.divf %17, %20 : vector<8x128xf32>
    %22 = vector.extract_strided_slice %21 {offsets = [0, 0], sizes = [8, 4], strides = [1, 1]} : vector<8x128xf32> to vector<8x4xf32>
    %c0_13 = arith.constant 0 : index
    %c0_14 = arith.constant 0 : index
    %23 = vector.load %arg6[%c0_13, %c0_14] : memref<8x4xf32, #tpu.memory_space<vmem>>, vector<8x4xf32>
    tpu.vector_store %arg6[%c0_13, %c0_14], %22 {strides = array<i32>} : memref<8x4xf32, #tpu.memory_space<vmem>>, vector<8x4xf32>,
    return
  }
  func.func @transform_0(%arg0: i32) -> (i32, i32) {
    %c0_i32 = arith.constant 0 : i32
    %c0_i32_0 = arith.constant 0 : i32
    return %arg0, %c0_i32 : i32, i32
  }
  func.func @transform_1(%arg0: i32) -> (i32, i32) {
    %c0_i32 = arith.constant 0 : i32
    %c0_i32_0 = arith.constant 0 : i32
    %c0_i32_1 = arith.constant 0 : i32
    return %c0_i32, %c0_i32_0 : i32, i32
  }
  func.func @transform_2(%arg0: i32) -> (i32, i32) {
    %c0_i32 = arith.constant 0 : i32
    %c0_i32_0 = arith.constant 0 : i32
    %c0_i32_1 = arith.constant 0 : i32
    return %c0_i32, %c0_i32_0 : i32, i32
  }
  func.func @transform_3(%arg0: i32) -> (i32, i32) {
    %c0_i32 = arith.constant 0 : i32
    %c0_i32_0 = arith.constant 0 : i32
    %c0_i32_1 = arith.constant 0 : i32
    return %c0_i32, %c0_i32_0 : i32, i32
  }
  func.func @transform_4(%arg0: i32) -> (i32, i32) {
    %c0_i32 = arith.constant 0 : i32
    %c0_i32_0 = arith.constant 0 : i32
    %c0_i32_1 = arith.constant 0 : i32
    return %c0_i32, %c0_i32_0 : i32, i32
  }
  func.func @transform_5(%arg0: i32) -> (i32, i32) {
    %c0_i32 = arith.constant 0 : i32
    %c0_i32_0 = arith.constant 0 : i32
    return %arg0, %c0_i32 : i32, i32
  }
}

</mosaic_0001>

<llo_original>
// kernel: actor_net_forward.1
$region0: #{actor_net_forward.1}
  #allocation0 [shape = 'u32[]', space=smem, size = 0x4, offset = 0x4, fixed_abs, tag = 'smem constant byte address 0x4 - core index']
  #allocation1 [shape = 'u32[144,128]{1,0:T(1,128)}', space=vmem, size = 0x12000, scoped, tag = 'internal scratch']
  %s0 = inlined_call_operand.hbm [shape: f32[8,16], index: 0, kind: input, shape index: {}]
  %s1 = inlined_call_operand.hbm [shape: f32[16,128], index: 1, kind: input, shape index: {}]
  %s2 = inlined_call_operand.vmem [shape: f32[1,128], index: 2, kind: input, shape index: {}]
  %s3 = inlined_call_operand.hbm [shape: f32[128,128], index: 3, kind: input, shape index: {}]
  %s4 = inlined_call_operand.vmem [shape: f32[1,128], index: 4, kind: input, shape index: {}]
  %s5 = inlined_call_operand.vmem [shape: f32[8,4], index: 5, kind: output, shape index: {}]
  %s6 = sld [smem:[#allocation0]]
  $region42: #{actor_net_forward.1} parent=0
    _
  %s8 = ssub.s32 1, %s6
  %s9 = scalar_select 0, %s8, %s6
  $region1: #{actor_net_forward.1} parent=0
    #allocation2 [shape = 'u8[4096]{0}', space=vmem, size = 0x1000, scoped, tag = 'input window, operand 0, single buffered']
    #allocation3 [shape = 's32[1]{0}', space=sflag, size = 0x4, scoped, tag = 'scoped memory for actor_net_forward.1']
    #allocation4 [shape = 'u8[8192]{0}', space=vmem, size = 0x2000, scoped, tag = 'input window, operand 1, single buffered']
    #allocation5 [shape = 's32[1]{0}', space=sflag, size = 0x4, scoped, tag = 'scoped memory for actor_net_forward.1']
    #allocation6 [shape = 'u8[65536]{0}', space=vmem, size = 0x10000, scoped, tag = 'input window, operand 3, single buffered']
    %10 = vsyncpa [#allocation3], 0
    %11 = vsyncpa [#allocation5], 0
    // Predicated region
    $region2: #{actor_net_forward.1} parent=1 // pred_check
      _
    $region3: #{actor_net_forward.1} parent=1 // pred_check_branch
      %13 = sbr.rel (0) target = $region5
    $region4: #{actor_net_forward.1} parent=1 // pred_region
      %s15 = ssub.s32 128, 128
      %16 = vsyncadd [#allocation3], %s15
      %s18 = sshll.u32 [#allocation2], 4
      %s19 = int_to_ptr.vmem [resolvable:$true] %s18
      %21 = dma.hbm_to_vmem [thread:$0]  %s0, 128, %s19, [#allocation3]
    $region5: #{actor_net_forward.1} parent=1 // pred_fallthru
      _
    // Predicated region
    $region6: #{actor_net_forward.1} parent=1 // pred_check
      _
    $region7: #{actor_net_forward.1} parent=1 // pred_check_branch
      %23 = sbr.rel (0) target = $region9
    $region8: #{actor_net_forward.1} parent=1 // pred_region
      %s25 = ssub.s32 256, 256
      %26 = vsyncadd [#allocation5], %s25
      %s27 = sshll.u32 [#allocation4], 4
      %s28 = int_to_ptr.vmem [resolvable:$true] %s27
      %33 = dma.hbm_to_vmem [thread:$0]  %s1, 256, %s28, [#allocation5], 128, 128, 8
    $region9: #{actor_net_forward.1} parent=1 // pred_fallthru
      _
    // Predicated region
    $region10: #{actor_net_forward.1} parent=1 // pred_check
      _
    $region11: #{actor_net_forward.1} parent=1 // pred_check_branch
      %35 = sbr.rel (0) target = $region13
    $region12: #{actor_net_forward.1} parent=1 // pred_region
      _
    $region13: #{actor_net_forward.1} parent=1 // pred_fallthru
      _
    // Predicated region
    $region14: #{actor_net_forward.1} parent=1 // pred_check
      _
    $region15: #{actor_net_forward.1} parent=1 // pred_check_branch
      %37 = sbr.rel (0) target = $region17
    $region16: #{actor_net_forward.1} parent=1 // pred_region
      %s39 = ssub.s32 2048, 2048
      %40 = vsyncadd [#allocation5], %s39
      %s41 = sshll.u32 [#allocation6], 4
      %s42 = int_to_ptr.vmem [resolvable:$true] %s41
      %47 = dma.hbm_to_vmem [thread:$0]  %s3, 2048, %s42, [#allocation5], 128, 128, 8
    $region17: #{actor_net_forward.1} parent=1 // pred_fallthru
      _
    // Predicated region
    $region18: #{actor_net_forward.1} parent=1 // pred_check
      _
    $region19: #{actor_net_forward.1} parent=1 // pred_check_branch
      %49 = sbr.rel (0) target = $region21
    $region20: #{actor_net_forward.1} parent=1 // pred_region
      _
    $region21: #{actor_net_forward.1} parent=1 // pred_fallthru
      _
    // Predicated region
    $region22: #{actor_net_forward.1} parent=1 // pred_check
      _
    $region23: #{actor_net_forward.1} parent=1 // pred_check_branch
      %51 = sbr.rel (0) target = $region25
    $region24: #{actor_net_forward.1} parent=1 // pred_region
      %52 = dma.done [#allocation3], 128
    $region25: #{actor_net_forward.1} parent=1 // pred_fallthru
      _
    // Predicated region
    $region26: #{actor_net_forward.1} parent=1 // pred_check
      _
    $region27: #{actor_net_forward.1} parent=1 // pred_check_branch
      %54 = sbr.rel (0) target = $region29
    $region28: #{actor_net_forward.1} parent=1 // pred_region
      %55 = dma.done [#allocation5], 256
    $region29: #{actor_net_forward.1} parent=1 // pred_fallthru
      _
    // Predicated region
    $region30: #{actor_net_forward.1} parent=1 // pred_check
      _
    $region31: #{actor_net_forward.1} parent=1 // pred_check_branch
      %57 = sbr.rel (0) target = $region33
    $region32: #{actor_net_forward.1} parent=1 // pred_region
      %58 = dma.done [#allocation5], 2048
    $region33: #{actor_net_forward.1} parent=1 // pred_fallthru
      _
    %v59 = vld [vmem:[#allocation2] sm:$0xff]
    %v60 = vld [vmem:[#allocation4] sm:$0xff]
    %v61 = vld [vmem:[#allocation4 + $0x8] sm:$0xff]
    %v62 = vld [vmem:[%s2] sm:$0x1]
    %v64 = vlaneseq
    %v65 = vshrl.u32 %v64, 7
    %v66 = vsub.s32 0, %v65
    %v67 = vrot.slane %v62, %v66
    %vm69 = vcmask 130048
    %v71 = vsel %vm69, %v59, 0
    %73 = vmatprep.subr.mxu0 0.0
    %74 = vmatpush1.msra.mxu0 %v60
    %75 = vmatprep.subr.mxu0 0.0
    %76 = vmatpush1.msra.mxu0 %v61
    %77 = vmatprep.subr.mxu0 0.0
    %78 = vmatpush1.msra.mxu0 0.0
    %79 = vmatprep.subr.mxu0 0.0
    %80 = vmatpush1.msra.mxu0 0.0
    %81 = vmatprep.subr.mxu0 0.0
    %82 = vmatpush1.msra.mxu0 0.0
    %83 = vmatprep.subr.mxu0 0.0
    %84 = vmatpush1.msra.mxu0 0.0
    %85 = vmatprep.subr.mxu0 0.0
    %86 = vmatpush1.msra.mxu0 0.0
    %87 = vmatprep.subr.mxu0 0.0
    %88 = vmatpush1.msra.mxu0 0.0
    %89 = vmatprep.subr.mxu0 0.0
    %90 = vmatpush1.msra.mxu0 0.0
    %91 = vmatprep.subr.mxu0 0.0
    %92 = vmatpush1.msra.mxu0 0.0
    %93 = vmatprep.subr.mxu0 0.0
    %94 = vmatpush1.msra.mxu0 0.0
    %95 = vmatprep.subr.mxu0 0.0
    %96 = vmatpush1.msra.mxu0 0.0
    %97 = vmatprep.subr.mxu0 0.0
    %98 = vmatpush1.msra.mxu0 0.0
    %99 = vmatprep.subr.mxu0 0.0
    %100 = vmatpush1.msra.mxu0 0.0
    %101 = vmatprep.subr.mxu0 0.0
    %102 = vmatpush1.msra.mxu0 0.0
    %103 = vmatprep.subr.mxu0 0.0
    %104 = vmatpush1.msra.mxu0 0.0
    %105 = vmatprep.subr.mxu0 0.0
    %106 = vmatpush1.msra.mxu0 0.0
    %107 = vmatprep.subr.mxu0 0.0
    %108 = vmatpush1.msra.mxu0 0.0
    %109 = vmatprep.subr.mxu0 0.0
    %110 = vmatpush1.msra.mxu0 0.0
    %111 = vmatprep.subr.mxu0 0.0
    %112 = vmatpush1.msra.mxu0 0.0
    %113 = vmatprep.subr.mxu0 0.0
    %114 = vmatpush1.msra.mxu0 0.0
    %115 = vmatprep.subr.mxu0 0.0
    %116 = vmatpush1.msra.mxu0 0.0
    %117 = vmatprep.subr.mxu0 0.0
    %118 = vmatpush1.msra.mxu0 0.0
    %119 = vmatprep.subr.mxu0 0.0
    %120 = vmatpush1.msra.mxu0 0.0
    %121 = vmatprep.subr.mxu0 0.0
    %122 = vmatpush1.msra.mxu0 0.0
    %123 = vmatprep.subr.mxu0 0.0
    %124 = vmatpush1.msra.mxu0 0.0
    %125 = vmatprep.subr.mxu0 0.0
    %126 = vmatpush1.msra.mxu0 0.0
    %127 = vmatprep.subr.mxu0 0.0
    %128 = vmatpush1.msra.mxu0 0.0
    %129 = vmatprep.subr.mxu0 0.0
    %130 = vmatpush1.msra.mxu0 0.0
    %131 = vmatprep.subr.mxu0 0.0
    %132 = vmatpush1.msra.mxu0 0.0
    %133 = vmatprep.subr.mxu0 0.0
    %134 = vmatpush1.msra.mxu0 0.0
    %135 = vmatprep.subr.mxu0 0.0
    %136 = vmatpush1.msra.mxu0 0.0
    %137 = vmatprep.mubr.f32.mxu0 0.0
    %138 = vmatmul.mubr.f32.gmra.mrb[0].mxu0 %v71
    %v139 = vpop.f32.mrb[0].mxu0
    %v140 = vadd.f32 %v67, %v139
    %v141 = vpop.f32.mrb[0].mxu0
    %142 = vdwg.mxu0
    %v143 = vmax.f32 %v140, 0.0
    %v144 = vld [vmem:[#allocation6] sm:$0xff]
    %v145 = vld [vmem:[#allocation6 + $0x8] sm:$0xff]
    %v146 = vld [vmem:[#allocation6 + $0x10] sm:$0xff]
    %v147 = vld [vmem:[#allocation6 + $0x18] sm:$0xff]
    %v148 = vld [vmem:[#allocation6 + $0x20] sm:$0xff]
    %v149 = vld [vmem:[#allocation6 + $0x28] sm:$0xff]
    %v150 = vld [vmem:[#allocation6 + $0x30] sm:$0xff]
    %v151 = vld [vmem:[#allocation6 + $0x38] sm:$0xff]
    %v152 = vld [vmem:[#allocation6 + $0x40] sm:$0xff]
    %v153 = vld [vmem:[#allocation6 + $0x48] sm:$0xff]
    %v154 = vld [vmem:[#allocation6 + $0x50] sm:$0xff]
    %v155 = vld [vmem:[#allocation6 + $0x58] sm:$0xff]
    %v156 = vld [vmem:[#allocation6 + $0x60] sm:$0xff]
    %v157 = vld [vmem:[#allocation6 + $0x68] sm:$0xff]
    %v158 = vld [vmem:[#allocation6 + $0x70] sm:$0xff]
    %v159 = vld [vmem:[#allocation6 + $0x78] sm:$0xff]
    %v160 = vld [vmem:[%s4] sm:$0x1]
    %v162 = vlaneseq
    %v163 = vshrl.u32 %v162, 7
    %v164 = vsub.s32 0, %v163
    %v165 = vrot.slane %v160, %v164
    %167 = vmatprep.subr.mxu0 0.0
    %168 = vmatpush1.msra.mxu0 %v144
    %169 = vmatprep.subr.mxu0 0.0
    %170 = vmatpush1.msra.mxu0 %v145
    %171 = vmatprep.subr.mxu0 0.0
    %172 = vmatpush1.msra.mxu0 %v146
    %173 = vmatprep.subr.mxu0 0.0
    %174 = vmatpush1.msra.mxu0 %v147
    %175 = vmatprep.subr.mxu0 0.0
    %176 = vmatpush1.msra.mxu0 %v148
    %177 = vmatprep.subr.mxu0 0.0
    %178 = vmatpush1.msra.mxu0 %v149
    %179 = vmatprep.subr.mxu0 0.0
    %180 = vmatpush1.msra.mxu0 %v150
    %181 = vmatprep.subr.mxu0 0.0
    %182 = vmatpush1.msra.mxu0 %v151
    %183 = vmatprep.subr.mxu0 0.0
    %184 = vmatpush1.msra.mxu0 %v152
    %185 = vmatprep.subr.mxu0 0.0
    %186 = vmatpush1.msra.mxu0 %v153
    %187 = vmatprep.subr.mxu0 0.0
    %188 = vmatpush1.msra.mxu0 %v154
    %189 = vmatprep.subr.mxu0 0.0
    %190 = vmatpush1.msra.mxu0 %v155
    %191 = vmatprep.subr.mxu0 0.0
    %192 = vmatpush1.msra.mxu0 %v156
    %193 = vmatprep.subr.mxu0 0.0
    %194 = vmatpush1.msra.mxu0 %v157
    %195 = vmatprep.subr.mxu0 0.0
    %196 = vmatpush1.msra.mxu0 %v158
    %197 = vmatprep.subr.mxu0 0.0
    %198 = vmatpush1.msra.mxu0 %v159
    %199 = vmatprep.subr.mxu0 0.0
    %200 = vmatpush1.msra.mxu0 0.0
    %201 = vmatprep.subr.mxu0 0.0
    %202 = vmatpush1.msra.mxu0 0.0
    %203 = vmatprep.subr.mxu0 0.0
    %204 = vmatpush1.msra.mxu0 0.0
    %205 = vmatprep.subr.mxu0 0.0
    %206 = vmatpush1.msra.mxu0 0.0
    %207 = vmatprep.subr.mxu0 0.0
    %208 = vmatpush1.msra.mxu0 0.0
    %209 = vmatprep.subr.mxu0 0.0
    %210 = vmatpush1.msra.mxu0 0.0
    %211 = vmatprep.subr.mxu0 0.0
    %212 = vmatpush1.msra.mxu0 0.0
    %213 = vmatprep.subr.mxu0 0.0
    %214 = vmatpush1.msra.mxu0 0.0
    %215 = vmatprep.subr.mxu0 0.0
    %216 = vmatpush1.msra.mxu0 0.0
    %217 = vmatprep.subr.mxu0 0.0
    %218 = vmatpush1.msra.mxu0 0.0
    %219 = vmatprep.subr.mxu0 0.0
    %220 = vmatpush1.msra.mxu0 0.0
    %221 = vmatprep.subr.mxu0 0.0
    %222 = vmatpush1.msra.mxu0 0.0
    %223 = vmatprep.subr.mxu0 0.0
    %224 = vmatpush1.msra.mxu0 0.0
    %225 = vmatprep.subr.mxu0 0.0
    %226 = vmatpush1.msra.mxu0 0.0
    %227 = vmatprep.subr.mxu0 0.0
    %228 = vmatpush1.msra.mxu0 0.0
    %229 = vmatprep.subr.mxu0 0.0
    %230 = vmatpush1.msra.mxu0 0.0
    %231 = vmatprep.mubr.f32.mxu0 0.0
    %232 = vmatmul.mubr.f32.gmra.mrb[0].mxu0 %v143
    %v233 = vpop.f32.mrb[0].mxu0
    %v234 = vadd.f32 %v165, %v233
    %v235 = vpop.f32.mrb[0].mxu0
    %236 = vdwg.mxu0
    %237 = vmax.xlane.f32.xlu0 %v234
    %v238 = vpop.xlane.xlu0 %237
    %v239 = vsub.f32 %v234, %v238
    %v240 = vmul.f32 %v239, 1.442695
    %v241 = vpow.pop %v240
    %242 = vadd.xlane.f32.xlu0 %v241
    %v243 = vpop.xlane.xlu0 %242
    %v244 = vrcp.pop %v243
    %v245 = vmul.f32 %v241, %v244
    %vm246 = vcmask 31744
    %247 = vst.msk [vmem:[%s5] sm:$0xff] %vm246, %v245
    // Predicated region
    $region34: #{actor_net_forward.1} parent=1 // pred_check
      _
    $region35: #{actor_net_forward.1} parent=1 // pred_check_branch
      %249 = sbr.rel (0) target = $region37
    $region36: #{actor_net_forward.1} parent=1 // pred_region
      _
    $region37: #{actor_net_forward.1} parent=1 // pred_fallthru
      _
    // Predicated region
    $region38: #{actor_net_forward.1} parent=1 // pred_check
      _
    $region39: #{actor_net_forward.1} parent=1 // pred_check_branch
      %251 = sbr.rel (0) target = $region41
    $region40: #{actor_net_forward.1} parent=1 // pred_region
      _
    $region41: #{actor_net_forward.1} parent=1 // pred_fallthru
      _
    %252 = vsyncpa [#allocation3], 1
    %253 = vsyncpa [#allocation5], 1

</llo_original>
